<compile_context>
chip_gen: v7x
topology: tpu7x:2x2x1
jax: 0.10.0
libtpu: 0.0.40
codegen_flags: <defaults>
</compile_context>

<pallas_src>
import functools

import jax
import jax.numpy as jnp
from jax import lax
from jax.experimental import pallas as pl
from jax.experimental.pallas import tpu as pltpu


def _leaky_relu(v, slope=0.2):
    return jnp.where(v > 0, v, slope * v)


def ms_rb_kernel(x_ref, w1_ref, w2_ref, w4_ref, out_ref, *, H, W):
    # x_ref : (1, BC, HW)  BC = B*C images folded onto sublanes, HW on lanes
    # w1/w2 : (BC, 10*BC)  [9 block-diag tap weights | bias column-block]
    # w4    : (BC, 2*BC)   [block-diag 1x1 weight    | bias column-block]
    # out   : (1, BC, HW)
    x = x_ref[0]                                   # (BC, HW); also the residual
    BC, HW = x.shape
    ones = jnp.ones_like(x)                        # bias rows for the fused matmuls

    lane = lax.broadcasted_iota(jnp.int32, (1, HW), 1)
    if W & (W - 1) == 0:                           # power-of-two width: bit ops
        col = lane & (W - 1)
    else:
        col = lane % W

    # Hoisted, de-duplicated tap-validity masks (shared by both convs).
    row_mask = {}
    col_mask = {}
    for d in (1, 2):
        row_mask[d] = lane < (H - d) * W           # dh = +d
        row_mask[-d] = lane >= d * W               # dh = -d
        col_mask[d] = col < (W - d)                # dw = +d
        col_mask[-d] = col >= d                    # dw = -d

    def im2col(dil):
        """Stack the 9 masked taps + a ones block along sublanes: (10*BC, HW)."""
        pieces = []
        for kh in range(3):
            for kw in range(3):
                dh = dil * (kh - 1)
                dw = dil * (kw - 1)
                s = dh * W + dw                    # flat shift of the source
                # patch[p] = x[p + s]  (wrap-around garbage masked below)
                shifted = x if s == 0 else jnp.roll(x, -s, axis=1)
                m = None
                if dh != 0:
                    m = row_mask[dh]
                if dw != 0:
                    m = col_mask[dw] if m is None else (m & col_mask[dw])
                pieces.append(shifted if m is None else jnp.where(m, shifted, 0.0))
        pieces.append(ones)                        # bias row-block
        return jnp.concatenate(pieces, axis=0)

    # One MXU contraction per conv (bias folded in), sequential so only one
    # im2col is live at a time.
    x1 = _leaky_relu(jnp.dot(w1_ref[...], im2col(1),
                             preferred_element_type=jnp.float32))
    x2 = _leaky_relu(jnp.dot(w2_ref[...], im2col(2),
                             preferred_element_type=jnp.float32))
    x3 = x1 + x2

    x3_aug = jnp.concatenate([x3, ones], axis=0)   # (2*BC, HW)
    x4 = jnp.dot(w4_ref[...], x3_aug, preferred_element_type=jnp.float32)
    out_ref[0] = x4 + x


def _pick_batch_fold(N, C):
    """Largest divisor B of N with B*C <= 8 (fill the sublane axis)."""
    cap = max(1, 8 // C)
    for B in range(min(cap, N), 0, -1):
        if N % B == 0:
            return B
    return 1


def _fuse_conv3x3_weight(w_hwio, b, B):
    """(3,3,Cin,Cout) HWIO + (Cout,) bias -> (B*Cout, 10*B*Cin) fused weight."""
    C = w_hwio.shape[3]
    BC = B * C
    eye_b = jnp.eye(B, dtype=w_hwio.dtype)
    blocks = []
    for kh in range(3):
        for kw in range(3):
            w_t = w_hwio[kh, kw].T                  # (Cout, Cin)
            blocks.append(jnp.kron(eye_b, w_t))     # (BC, BC) block-diagonal
    bias_block = jnp.zeros((BC, BC), w_hwio.dtype).at[:, 0].set(jnp.tile(b, B))
    blocks.append(bias_block)
    return jnp.concatenate(blocks, axis=1)          # (BC, 10*BC)


def _fuse_conv1x1_weight(w_io, b, B):
    """(Cin,Cout) + (Cout,) bias -> (B*Cout, 2*B*Cin) fused weight."""
    C = w_io.shape[1]
    BC = B * C
    blk = jnp.kron(jnp.eye(B, dtype=w_io.dtype), w_io.T)
    bias_block = jnp.zeros((BC, BC), w_io.dtype).at[:, 0].set(jnp.tile(b, B))
    return jnp.concatenate([blk, bias_block], axis=1)   # (BC, 2*BC)


@jax.jit
def ms_rb_forward(x_nchw, w1, b1, w2, b2, w4, b4):
    """x_nchw: (N, C, H, W) f32. w1/w2 in HWIO (3,3,Cin,Cout), w4 (Cin,Cout)."""
    N, C, H, W = x_nchw.shape
    HW = H * W
    B = _pick_batch_fold(N, C)
    BC = B * C
    G = N // B

    # Free contiguous reshape: B images folded onto the sublane axis, spatial
    # on the lane axis.
    x_flat = x_nchw.reshape(G, BC, HW)

    w1_f = _fuse_conv3x3_weight(w1, b1, B)          # (BC, 10*BC)
    w2_f = _fuse_conv3x3_weight(w2, b2, B)          # (BC, 10*BC)
    w4_f = _fuse_conv1x1_weight(w4, b4, B)          # (BC, 2*BC)

    kernel = functools.partial(ms_rb_kernel, H=H, W=W)

    out_flat = pl.pallas_call(
        kernel,
        out_shape=jax.ShapeDtypeStruct((G, BC, HW), jnp.float32),
        grid_spec=pltpu.PrefetchScalarGridSpec(
            num_scalar_prefetch=0,
            grid=(G,),
            in_specs=[
                pl.BlockSpec((1, BC, HW), lambda n: (n, 0, 0)),
                pl.BlockSpec((BC, 10 * BC), lambda n: (0, 0)),
                pl.BlockSpec((BC, 10 * BC), lambda n: (0, 0)),
                pl.BlockSpec((BC, 2 * BC), lambda n: (0, 0)),
            ],
            out_specs=pl.BlockSpec((1, BC, HW), lambda n: (n, 0, 0)),
        ),
        compiler_params=pltpu.CompilerParams(
            dimension_semantics=("parallel",)),
    )(x_flat, w1_f, w2_f, w4_f)

    return out_flat.reshape(N, C, H, W)


def ms_rb_reference(x_nchw, w1, b1, w2, b2, w4, b4):
    """Pure-JAX reference (lax.conv) mirroring the PyTorch forward."""
    dn = lax.conv_dimension_numbers(x_nchw.shape, (3, 3, 1, 1),
                                    ('NCHW', 'HWIO', 'NCHW'))

    def conv(x, w_hwio, b, dil, pad):
        y = lax.conv_general_dilated(
            x, w_hwio, window_strides=(1, 1),
            padding=((pad, pad), (pad, pad)),
            rhs_dilation=(dil, dil), dimension_numbers=dn,
            precision=lax.Precision.HIGHEST)
        return y + b.reshape(1, -1, 1, 1)

    def lrelu(v):
        return jnp.where(v > 0, v, 0.2 * v)

    x1 = lrelu(conv(x_nchw, w1, b1, 1, 1))
    x2 = lrelu(conv(x_nchw, w2, b2, 2, 2))
    x3 = x1 + x2
    w4_hwio = w4.reshape(1, 1, *w4.shape)
    x4 = conv(x3, w4_hwio, b4, 1, 0)
    return x4 + x_nchw


if __name__ == "__main__":
    num_feats = 4
    N, C, H, W = 2, num_feats, 16, 16

    key = jax.random.PRNGKey(0)
    kx, k1, k2, k3, k4, k5, k6 = jax.random.split(key, 7)

    x = jax.random.normal(kx, (N, C, H, W), jnp.float32)

    # Deterministic synthetic parameters (HWIO for 3x3, IO for 1x1).
    w1 = jax.random.normal(k1, (3, 3, C, C), jnp.float32) * 0.1
    b1 = jax.random.normal(k2, (C,), jnp.float32) * 0.1
    w2 = jax.random.normal(k3, (3, 3, C, C), jnp.float32) * 0.1
    b2 = jax.random.normal(k4, (C,), jnp.float32) * 0.1
    w4 = jax.random.normal(k5, (C, C), jnp.float32) * 0.1
    b4 = jax.random.normal(k6, (C,), jnp.float32) * 0.1

    out = ms_rb_forward(x, w1, b1, w2, b2, w4, b4)
    out = jax.block_until_ready(out)

    ref = ms_rb_reference(x, w1, b1, w2, b2, w4, b4)
    assert out.shape == (N, C, H, W)
    assert jnp.allclose(out, ref, atol=2e-3, rtol=2e-3), "mismatch vs reference"

    print("KERNEL_OK")
</pallas_src>

<mosaic_0001>
module attributes {stable_mosaic.version = 11 : i64} {
  func.func @ms_rb_kernel(%arg0: i32, %arg1: memref<1x8x256xf32, #tpu.memory_space<vmem>>, %arg2: memref<8x80xf32, #tpu.memory_space<vmem>>, %arg3: memref<8x80xf32, #tpu.memory_space<vmem>>, %arg4: memref<8x16xf32, #tpu.memory_space<vmem>>, %arg5: memref<1x8x256xf32, #tpu.memory_space<vmem>>) attributes {dimension_semantics = [#tpu.dimension_semantics<parallel>], iteration_bounds = array<i64: 1>, scalar_prefetch = 0 : i64, scratch_operands = 0 : i64, tpu.core_type = #tpu.core_type<tc>, window_params = [{transform_indices = @transform_0, window_bounds = array<i64: 1, 8, 256>}, {pipeline_mode = #tpu.pipeline_mode<synchronous>, transform_indices = @transform_1, window_bounds = array<i64: 8, 80>}, {pipeline_mode = #tpu.pipeline_mode<synchronous>, transform_indices = @transform_2, window_bounds = array<i64: 8, 80>}, {pipeline_mode = #tpu.pipeline_mode<synchronous>, transform_indices = @transform_3, window_bounds = array<i64: 8, 16>}, {transform_indices = @transform_4, window_bounds = array<i64: 1, 8, 256>}]} {
    %c0 = arith.constant 0 : index
    %c0_0 = arith.constant 0 : index
    %c0_1 = arith.constant 0 : index
    %0 = vector.load %arg1[%c0, %c0_0, %c0_1] : memref<1x8x256xf32, #tpu.memory_space<vmem>>, vector<1x8x256xf32>
    %1 = vector.shape_cast %0 : vector<1x8x256xf32> to vector<8x256xf32>
    %cst = arith.constant 1.000000e+00 : f32
    %2 = vector.broadcast %cst : f32 to vector<8x256xf32>
    %3 = tpu.iota {dimensions = array<i32: 1>} : vector<1x256xi32>
    %c15_i32 = arith.constant 15 : i32
    %4 = vector.broadcast %c15_i32 : i32 to vector<1x256xi32>
    %5 = arith.andi %3, %4 : vector<1x256xi32>
    %c240_i32 = arith.constant 240 : i32
    %6 = vector.broadcast %c240_i32 : i32 to vector<1x256xi32>
    %7 = arith.cmpi slt, %3, %6 : vector<1x256xi32>
    %c16_i32 = arith.constant 16 : i32
    %8 = vector.broadcast %c16_i32 : i32 to vector<1x256xi32>
    %9 = arith.cmpi sge, %3, %8 : vector<1x256xi32>
    %c15_i32_2 = arith.constant 15 : i32
    %10 = vector.broadcast %c15_i32_2 : i32 to vector<1x256xi32>
    %11 = arith.cmpi slt, %5, %10 : vector<1x256xi32>
    %c1_i32 = arith.constant 1 : i32
    %12 = vector.broadcast %c1_i32 : i32 to vector<1x256xi32>
    %13 = arith.cmpi sge, %5, %12 : vector<1x256xi32>
    %c224_i32 = arith.constant 224 : i32
    %14 = vector.broadcast %c224_i32 : i32 to vector<1x256xi32>
    %15 = arith.cmpi slt, %3, %14 : vector<1x256xi32>
    %c32_i32 = arith.constant 32 : i32
    %16 = vector.broadcast %c32_i32 : i32 to vector<1x256xi32>
    %17 = arith.cmpi sge, %3, %16 : vector<1x256xi32>
    %c14_i32 = arith.constant 14 : i32
    %18 = vector.broadcast %c14_i32 : i32 to vector<1x256xi32>
    %19 = arith.cmpi slt, %5, %18 : vector<1x256xi32>
    %c2_i32 = arith.constant 2 : i32
    %20 = vector.broadcast %c2_i32 : i32 to vector<1x256xi32>
    %21 = arith.cmpi sge, %5, %20 : vector<1x256xi32>
    %c0_3 = arith.constant 0 : index
    %c0_4 = arith.constant 0 : index
    %22 = vector.load %arg2[%c0_3, %c0_4] : memref<8x80xf32, #tpu.memory_space<vmem>>, vector<8x80xf32>
    %23 = vector.extract_strided_slice %1 {offsets = [0, 239], sizes = [8, 17], strides = [1, 1]} : vector<8x256xf32> to vector<8x17xf32>
    %24 = vector.extract_strided_slice %1 {offsets = [0, 0], sizes = [8, 239], strides = [1, 1]} : vector<8x256xf32> to vector<8x239xf32>
    %25 = tpu.concatenate %23, %24 in 1 : vector<8x17xf32>, vector<8x239xf32> -> vector<8x256xf32>
    %26 = arith.andi %9, %13 : vector<1x256xi1>
    %cst_5 = arith.constant 0.000000e+00 : f32
    %27 = vector.shape_cast %26 : vector<1x256xi1> to vector<1x256xi1>
    %28 = vector.broadcast %27 : vector<1x256xi1> to vector<8x256xi1>
    %29 = vector.broadcast %cst_5 : f32 to vector<8x256xf32>
    %30 = arith.select %28, %25, %29 : vector<8x256xi1>, vector<8x256xf32>
    %31 = vector.extract_strided_slice %1 {offsets = [0, 240], sizes = [8, 16], strides = [1, 1]} : vector<8x256xf32> to vector<8x16xf32>
    %32 = vector.extract_strided_slice %1 {offsets = [0, 0], sizes = [8, 240], strides = [1, 1]} : vector<8x256xf32> to vector<8x240xf32>
    %33 = tpu.concatenate %31, %32 in 1 : vector<8x16xf32>, vector<8x240xf32> -> vector<8x256xf32>
    %cst_6 = arith.constant 0.000000e+00 : f32
    %34 = vector.shape_cast %9 : vector<1x256xi1> to vector<1x256xi1>
    %35 = vector.broadcast %34 : vector<1x256xi1> to vector<8x256xi1>
    %36 = vector.broadcast %cst_6 : f32 to vector<8x256xf32>
    %37 = arith.select %35, %33, %36 : vector<8x256xi1>, vector<8x256xf32>
    %38 = vector.extract_strided_slice %1 {offsets = [0, 241], sizes = [8, 15], strides = [1, 1]} : vector<8x256xf32> to vector<8x15xf32>
    %39 = vector.extract_strided_slice %1 {offsets = [0, 0], sizes = [8, 241], strides = [1, 1]} : vector<8x256xf32> to vector<8x241xf32>
    %40 = tpu.concatenate %38, %39 in 1 : vector<8x15xf32>, vector<8x241xf32> -> vector<8x256xf32>
    %41 = arith.andi %9, %11 : vector<1x256xi1>
    %cst_7 = arith.constant 0.000000e+00 : f32
    %42 = vector.shape_cast %41 : vector<1x256xi1> to vector<1x256xi1>
    %43 = vector.broadcast %42 : vector<1x256xi1> to vector<8x256xi1>
    %44 = vector.broadcast %cst_7 : f32 to vector<8x256xf32>
    %45 = arith.select %43, %40, %44 : vector<8x256xi1>, vector<8x256xf32>
    %46 = vector.extract_strided_slice %1 {offsets = [0, 255], sizes = [8, 1], strides = [1, 1]} : vector<8x256xf32> to vector<8x1xf32>
    %47 = vector.extract_strided_slice %1 {offsets = [0, 0], sizes = [8, 255], strides = [1, 1]} : vector<8x256xf32> to vector<8x255xf32>
    %48 = tpu.concatenate %46, %47 in 1 : vector<8x1xf32>, vector<8x255xf32> -> vector<8x256xf32>
    %cst_8 = arith.constant 0.000000e+00 : f32
    %49 = vector.shape_cast %13 : vector<1x256xi1> to vector<1x256xi1>
    %50 = vector.broadcast %49 : vector<1x256xi1> to vector<8x256xi1>
    %51 = vector.broadcast %cst_8 : f32 to vector<8x256xf32>
    %52 = arith.select %50, %48, %51 : vector<8x256xi1>, vector<8x256xf32>
    %53 = vector.extract_strided_slice %1 {offsets = [0, 1], sizes = [8, 255], strides = [1, 1]} : vector<8x256xf32> to vector<8x255xf32>
    %54 = vector.extract_strided_slice %1 {offsets = [0, 0], sizes = [8, 1], strides = [1, 1]} : vector<8x256xf32> to vector<8x1xf32>
    %55 = tpu.concatenate %53, %54 in 1 : vector<8x255xf32>, vector<8x1xf32> -> vector<8x256xf32>
    %cst_9 = arith.constant 0.000000e+00 : f32
    %56 = vector.shape_cast %11 : vector<1x256xi1> to vector<1x256xi1>
    %57 = vector.broadcast %56 : vector<1x256xi1> to vector<8x256xi1>
    %58 = vector.broadcast %cst_9 : f32 to vector<8x256xf32>
    %59 = arith.select %57, %55, %58 : vector<8x256xi1>, vector<8x256xf32>
    %60 = vector.extract_strided_slice %1 {offsets = [0, 15], sizes = [8, 241], strides = [1, 1]} : vector<8x256xf32> to vector<8x241xf32>
    %61 = vector.extract_strided_slice %1 {offsets = [0, 0], sizes = [8, 15], strides = [1, 1]} : vector<8x256xf32> to vector<8x15xf32>
    %62 = tpu.concatenate %60, %61 in 1 : vector<8x241xf32>, vector<8x15xf32> -> vector<8x256xf32>
    %63 = arith.andi %7, %13 : vector<1x256xi1>
    %cst_10 = arith.constant 0.000000e+00 : f32
    %64 = vector.shape_cast %63 : vector<1x256xi1> to vector<1x256xi1>
    %65 = vector.broadcast %64 : vector<1x256xi1> to vector<8x256xi1>
    %66 = vector.broadcast %cst_10 : f32 to vector<8x256xf32>
    %67 = arith.select %65, %62, %66 : vector<8x256xi1>, vector<8x256xf32>
    %68 = vector.extract_strided_slice %1 {offsets = [0, 16], sizes = [8, 240], strides = [1, 1]} : vector<8x256xf32> to vector<8x240xf32>
    %69 = vector.extract_strided_slice %1 {offsets = [0, 0], sizes = [8, 16], strides = [1, 1]} : vector<8x256xf32> to vector<8x16xf32>
    %70 = tpu.concatenate %68, %69 in 1 : vector<8x240xf32>, vector<8x16xf32> -> vector<8x256xf32>
    %cst_11 = arith.constant 0.000000e+00 : f32
    %71 = vector.shape_cast %7 : vector<1x256xi1> to vector<1x256xi1>
    %72 = vector.broadcast %71 : vector<1x256xi1> to vector<8x256xi1>
    %73 = vector.broadcast %cst_11 : f32 to vector<8x256xf32>
    %74 = arith.select %72, %70, %73 : vector<8x256xi1>, vector<8x256xf32>
    %75 = vector.extract_strided_slice %1 {offsets = [0, 17], sizes = [8, 239], strides = [1, 1]} : vector<8x256xf32> to vector<8x239xf32>
    %76 = vector.extract_strided_slice %1 {offsets = [0, 0], sizes = [8, 17], strides = [1, 1]} : vector<8x256xf32> to vector<8x17xf32>
    %77 = tpu.concatenate %75, %76 in 1 : vector<8x239xf32>, vector<8x17xf32> -> vector<8x256xf32>
    %78 = arith.andi %7, %11 : vector<1x256xi1>
    %cst_12 = arith.constant 0.000000e+00 : f32
    %79 = vector.shape_cast %78 : vector<1x256xi1> to vector<1x256xi1>
    %80 = vector.broadcast %79 : vector<1x256xi1> to vector<8x256xi1>
    %81 = vector.broadcast %cst_12 : f32 to vector<8x256xf32>
    %82 = arith.select %80, %77, %81 : vector<8x256xi1>, vector<8x256xf32>
    %83 = tpu.concatenate %30, %37, %45, %52, %1, %59, %67, %74, %82, %2 in 0 : vector<8x256xf32>, vector<8x256xf32>, vector<8x256xf32>, vector<8x256xf32>, vector<8x256xf32>, vector<8x256xf32>, vector<8x256xf32>, vector<8x256xf32>, vector<8x256xf32>, vector<8x256xf32> -> vector<80x256xf32>
    %cst_13 = arith.constant dense<0.000000e+00> : vector<8x256xf32>
    %84 = tpu.matmul %22, %83, %cst_13 {dimension_numbers = #tpu.dot_dimension_numbers<[1], [0], [0], [1], [0, 0, 1, 1], [], []>} : vector<8x80xf32>, vector<80x256xf32>, vector<8x256xf32> -> vector<8x256xf32>
    %cst_14 = arith.constant 0.000000e+00 : f32
    %85 = vector.broadcast %cst_14 : f32 to vector<8x256xf32>
    %86 = arith.cmpf ogt, %84, %85 : vector<8x256xf32>
    %cst_15 = arith.constant 2.000000e-01 : f32
    %87 = vector.broadcast %cst_15 : f32 to vector<8x256xf32>
    %88 = arith.mulf %87, %84 : vector<8x256xf32>
    %89 = arith.select %86, %84, %88 : vector<8x256xi1>, vector<8x256xf32>
    %c0_16 = arith.constant 0 : index
    %c0_17 = arith.constant 0 : index
    %90 = vector.load %arg3[%c0_16, %c0_17] : memref<8x80xf32, #tpu.memory_space<vmem>>, vector<8x80xf32>
    %91 = vector.extract_strided_slice %1 {offsets = [0, 222], sizes = [8, 34], strides = [1, 1]} : vector<8x256xf32> to vector<8x34xf32>
    %92 = vector.extract_strided_slice %1 {offsets = [0, 0], sizes = [8, 222], strides = [1, 1]} : vector<8x256xf32> to vector<8x222xf32>
    %93 = tpu.concatenate %91, %92 in 1 : vector<8x34xf32>, vector<8x222xf32> -> vector<8x256xf32>
    %94 = arith.andi %17, %21 : vector<1x256xi1>
    %cst_18 = arith.constant 0.000000e+00 : f32
    %95 = vector.shape_cast %94 : vector<1x256xi1> to vector<1x256xi1>
    %96 = vector.broadcast %95 : vector<1x256xi1> to vector<8x256xi1>
    %97 = vector.broadcast %cst_18 : f32 to vector<8x256xf32>
    %98 = arith.select %96, %93, %97 : vector<8x256xi1>, vector<8x256xf32>
    %99 = vector.extract_strided_slice %1 {offsets = [0, 224], sizes = [8, 32], strides = [1, 1]} : vector<8x256xf32> to vector<8x32xf32>
    %100 = vector.extract_strided_slice %1 {offsets = [0, 0], sizes = [8, 224], strides = [1, 1]} : vector<8x256xf32> to vector<8x224xf32>
    %101 = tpu.concatenate %99, %100 in 1 : vector<8x32xf32>, vector<8x224xf32> -> vector<8x256xf32>
    %cst_19 = arith.constant 0.000000e+00 : f32
    %102 = vector.shape_cast %17 : vector<1x256xi1> to vector<1x256xi1>
    %103 = vector.broadcast %102 : vector<1x256xi1> to vector<8x256xi1>
    %104 = vector.broadcast %cst_19 : f32 to vector<8x256xf32>
    %105 = arith.select %103, %101, %104 : vector<8x256xi1>, vector<8x256xf32>
    %106 = vector.extract_strided_slice %1 {offsets = [0, 226], sizes = [8, 30], strides = [1, 1]} : vector<8x256xf32> to vector<8x30xf32>
    %107 = vector.extract_strided_slice %1 {offsets = [0, 0], sizes = [8, 226], strides = [1, 1]} : vector<8x256xf32> to vector<8x226xf32>
    %108 = tpu.concatenate %106, %107 in 1 : vector<8x30xf32>, vector<8x226xf32> -> vector<8x256xf32>
    %109 = arith.andi %17, %19 : vector<1x256xi1>
    %cst_20 = arith.constant 0.000000e+00 : f32
    %110 = vector.shape_cast %109 : vector<1x256xi1> to vector<1x256xi1>
    %111 = vector.broadcast %110 : vector<1x256xi1> to vector<8x256xi1>
    %112 = vector.broadcast %cst_20 : f32 to vector<8x256xf32>
    %113 = arith.select %111, %108, %112 : vector<8x256xi1>, vector<8x256xf32>
    %114 = vector.extract_strided_slice %1 {offsets = [0, 254], sizes = [8, 2], strides = [1, 1]} : vector<8x256xf32> to vector<8x2xf32>
    %115 = vector.extract_strided_slice %1 {offsets = [0, 0], sizes = [8, 254], strides = [1, 1]} : vector<8x256xf32> to vector<8x254xf32>
    %116 = tpu.concatenate %114, %115 in 1 : vector<8x2xf32>, vector<8x254xf32> -> vector<8x256xf32>
    %cst_21 = arith.constant 0.000000e+00 : f32
    %117 = vector.shape_cast %21 : vector<1x256xi1> to vector<1x256xi1>
    %118 = vector.broadcast %117 : vector<1x256xi1> to vector<8x256xi1>
    %119 = vector.broadcast %cst_21 : f32 to vector<8x256xf32>
    %120 = arith.select %118, %116, %119 : vector<8x256xi1>, vector<8x256xf32>
    %121 = vector.extract_strided_slice %1 {offsets = [0, 2], sizes = [8, 254], strides = [1, 1]} : vector<8x256xf32> to vector<8x254xf32>
    %122 = vector.extract_strided_slice %1 {offsets = [0, 0], sizes = [8, 2], strides = [1, 1]} : vector<8x256xf32> to vector<8x2xf32>
    %123 = tpu.concatenate %121, %122 in 1 : vector<8x254xf32>, vector<8x2xf32> -> vector<8x256xf32>
    %cst_22 = arith.constant 0.000000e+00 : f32
    %124 = vector.shape_cast %19 : vector<1x256xi1> to vector<1x256xi1>
    %125 = vector.broadcast %124 : vector<1x256xi1> to vector<8x256xi1>
    %126 = vector.broadcast %cst_22 : f32 to vector<8x256xf32>
    %127 = arith.select %125, %123, %126 : vector<8x256xi1>, vector<8x256xf32>
    %128 = vector.extract_strided_slice %1 {offsets = [0, 30], sizes = [8, 226], strides = [1, 1]} : vector<8x256xf32> to vector<8x226xf32>
    %129 = vector.extract_strided_slice %1 {offsets = [0, 0], sizes = [8, 30], strides = [1, 1]} : vector<8x256xf32> to vector<8x30xf32>
    %130 = tpu.concatenate %128, %129 in 1 : vector<8x226xf32>, vector<8x30xf32> -> vector<8x256xf32>
    %131 = arith.andi %15, %21 : vector<1x256xi1>
    %cst_23 = arith.constant 0.000000e+00 : f32
    %132 = vector.shape_cast %131 : vector<1x256xi1> to vector<1x256xi1>
    %133 = vector.broadcast %132 : vector<1x256xi1> to vector<8x256xi1>
    %134 = vector.broadcast %cst_23 : f32 to vector<8x256xf32>
    %135 = arith.select %133, %130, %134 : vector<8x256xi1>, vector<8x256xf32>
    %136 = vector.extract_strided_slice %1 {offsets = [0, 32], sizes = [8, 224], strides = [1, 1]} : vector<8x256xf32> to vector<8x224xf32>
    %137 = vector.extract_strided_slice %1 {offsets = [0, 0], sizes = [8, 32], strides = [1, 1]} : vector<8x256xf32> to vector<8x32xf32>
    %138 = tpu.concatenate %136, %137 in 1 : vector<8x224xf32>, vector<8x32xf32> -> vector<8x256xf32>
    %cst_24 = arith.constant 0.000000e+00 : f32
    %139 = vector.shape_cast %15 : vector<1x256xi1> to vector<1x256xi1>
    %140 = vector.broadcast %139 : vector<1x256xi1> to vector<8x256xi1>
    %141 = vector.broadcast %cst_24 : f32 to vector<8x256xf32>
    %142 = arith.select %140, %138, %141 : vector<8x256xi1>, vector<8x256xf32>
    %143 = vector.extract_strided_slice %1 {offsets = [0, 34], sizes = [8, 222], strides = [1, 1]} : vector<8x256xf32> to vector<8x222xf32>
    %144 = vector.extract_strided_slice %1 {offsets = [0, 0], sizes = [8, 34], strides = [1, 1]} : vector<8x256xf32> to vector<8x34xf32>
    %145 = tpu.concatenate %143, %144 in 1 : vector<8x222xf32>, vector<8x34xf32> -> vector<8x256xf32>
    %146 = arith.andi %15, %19 : vector<1x256xi1>
    %cst_25 = arith.constant 0.000000e+00 : f32
    %147 = vector.shape_cast %146 : vector<1x256xi1> to vector<1x256xi1>
    %148 = vector.broadcast %147 : vector<1x256xi1> to vector<8x256xi1>
    %149 = vector.broadcast %cst_25 : f32 to vector<8x256xf32>
    %150 = arith.select %148, %145, %149 : vector<8x256xi1>, vector<8x256xf32>
    %151 = tpu.concatenate %98, %105, %113, %120, %1, %127, %135, %142, %150, %2 in 0 : vector<8x256xf32>, vector<8x256xf32>, vector<8x256xf32>, vector<8x256xf32>, vector<8x256xf32>, vector<8x256xf32>, vector<8x256xf32>, vector<8x256xf32>, vector<8x256xf32>, vector<8x256xf32> -> vector<80x256xf32>
    %cst_26 = arith.constant dense<0.000000e+00> : vector<8x256xf32>
    %152 = tpu.matmul %90, %151, %cst_26 {dimension_numbers = #tpu.dot_dimension_numbers<[1], [0], [0], [1], [0, 0, 1, 1], [], []>} : vector<8x80xf32>, vector<80x256xf32>, vector<8x256xf32> -> vector<8x256xf32>
    %cst_27 = arith.constant 0.000000e+00 : f32
    %153 = vector.broadcast %cst_27 : f32 to vector<8x256xf32>
    %154 = arith.cmpf ogt, %152, %153 : vector<8x256xf32>
    %cst_28 = arith.constant 2.000000e-01 : f32
    %155 = vector.broadcast %cst_28 : f32 to vector<8x256xf32>
    %156 = arith.mulf %155, %152 : vector<8x256xf32>
    %157 = arith.select %154, %152, %156 : vector<8x256xi1>, vector<8x256xf32>
    %158 = arith.addf %89, %157 : vector<8x256xf32>
    %159 = tpu.concatenate %158, %2 in 0 : vector<8x256xf32>, vector<8x256xf32> -> vector<16x256xf32>
    %c0_29 = arith.constant 0 : index
    %c0_30 = arith.constant 0 : index
    %160 = vector.load %arg4[%c0_29, %c0_30] : memref<8x16xf32, #tpu.memory_space<vmem>>, vector<8x16xf32>
    %cst_31 = arith.constant dense<0.000000e+00> : vector<8x256xf32>
    %161 = tpu.matmul %160, %159, %cst_31 {dimension_numbers = #tpu.dot_dimension_numbers<[1], [0], [0], [1], [0, 0, 1, 1], [], []>} : vector<8x16xf32>, vector<16x256xf32>, vector<8x256xf32> -> vector<8x256xf32>
    %162 = arith.addf %161, %1 : vector<8x256xf32>
    %c0_32 = arith.constant 0 : index
    %c0_33 = arith.constant 0 : index
    %c0_34 = arith.constant 0 : index
    %163 = vector.load %arg5[%c0_32, %c0_33, %c0_34] : memref<1x8x256xf32, #tpu.memory_space<vmem>>, vector<1x8x256xf32>
    %164 = vector.shape_cast %163 : vector<1x8x256xf32> to vector<8x256xf32>
    %165 = vector.shape_cast %162 : vector<8x256xf32> to vector<1x8x256xf32>
    tpu.vector_store %arg5[%c0_32, %c0_33, %c0_34], %165 {strides = array<i32>} : memref<1x8x256xf32, #tpu.memory_space<vmem>>, vector<1x8x256xf32>,
    return
  }
  func.func @transform_0(%arg0: i32) -> (i32, i32, i32) {
    %c0_i32 = arith.constant 0 : i32
    %c0_i32_0 = arith.constant 0 : i32
    %c0_i32_1 = arith.constant 0 : i32
    return %arg0, %c0_i32, %c0_i32_0 : i32, i32, i32
  }
  func.func @transform_1(%arg0: i32) -> (i32, i32) {
    %c0_i32 = arith.constant 0 : i32
    %c0_i32_0 = arith.constant 0 : i32
    %c0_i32_1 = arith.constant 0 : i32
    return %c0_i32, %c0_i32_0 : i32, i32
  }
  func.func @transform_2(%arg0: i32) -> (i32, i32) {
    %c0_i32 = arith.constant 0 : i32
    %c0_i32_0 = arith.constant 0 : i32
    %c0_i32_1 = arith.constant 0 : i32
    return %c0_i32, %c0_i32_0 : i32, i32
  }
  func.func @transform_3(%arg0: i32) -> (i32, i32) {
    %c0_i32 = arith.constant 0 : i32
    %c0_i32_0 = arith.constant 0 : i32
    %c0_i32_1 = arith.constant 0 : i32
    return %c0_i32, %c0_i32_0 : i32, i32
  }
  func.func @transform_4(%arg0: i32) -> (i32, i32, i32) {
    %c0_i32 = arith.constant 0 : i32
    %c0_i32_0 = arith.constant 0 : i32
    %c0_i32_1 = arith.constant 0 : i32
    return %arg0, %c0_i32, %c0_i32_0 : i32, i32, i32
  }
}

</mosaic_0001>

<llo_original>
// kernel: ms_rb_forward.1
$region0: #{ms_rb_forward.1}
  #allocation0 [shape = 'u32[]', space=smem, size = 0x4, offset = 0x4, fixed_abs, tag = 'smem constant byte address 0x4 - core index']
  #allocation1 [shape = 'u32[144,128]{1,0:T(1,128)}', space=vmem, size = 0x12000, scoped, tag = 'internal scratch']
  %s0 = inlined_call_operand.vmem [shape: f32[1,8,256], index: 0, kind: input, shape index: {}]
  %s1 = inlined_call_operand.vmem [shape: f32[8,80], index: 1, kind: input, shape index: {}]
  %s2 = inlined_call_operand.vmem [shape: f32[8,80], index: 2, kind: input, shape index: {}]
  %s3 = inlined_call_operand.vmem [shape: f32[8,16], index: 3, kind: input, shape index: {}]
  %s4 = inlined_call_operand.vmem [shape: f32[1,8,256], index: 4, kind: output, shape index: {}]
  %s5 = sld [smem:[#allocation0]]
  $region26: #{ms_rb_forward.1} parent=0
    _
  %s7 = ssub.s32 1, %s5
  %s8 = scalar_select 0, %s7, %s5
  // Predicated region
  $region2: #{ms_rb_forward.1} parent=0 // pred_check
    _
  $region3: #{ms_rb_forward.1} parent=0 // pred_check_branch
    %10 = sbr.rel (0) target = $region5
  $region4: #{ms_rb_forward.1} parent=0 // pred_region
    _
  $region5: #{ms_rb_forward.1} parent=0 // pred_fallthru
    _
  // Predicated region
  $region6: #{ms_rb_forward.1} parent=0 // pred_check
    _
  $region7: #{ms_rb_forward.1} parent=0 // pred_check_branch
    %12 = sbr.rel (0) target = $region9
  $region8: #{ms_rb_forward.1} parent=0 // pred_region
    _
  $region9: #{ms_rb_forward.1} parent=0 // pred_fallthru
    _
  // Predicated region
  $region10: #{ms_rb_forward.1} parent=0 // pred_check
    _
  $region11: #{ms_rb_forward.1} parent=0 // pred_check_branch
    %14 = sbr.rel (0) target = $region13
  $region12: #{ms_rb_forward.1} parent=0 // pred_region
    _
  $region13: #{ms_rb_forward.1} parent=0 // pred_fallthru
    _
  // Predicated region
  $region14: #{ms_rb_forward.1} parent=0 // pred_check
    _
  $region15: #{ms_rb_forward.1} parent=0 // pred_check_branch
    %16 = sbr.rel (0) target = $region17
  $region16: #{ms_rb_forward.1} parent=0 // pred_region
    _
  $region17: #{ms_rb_forward.1} parent=0 // pred_fallthru
    _
  %v17 = vld [vmem:[%s0] sm:$0xff]
  %v18 = vld [vmem:[%s0 + $0x8] sm:$0xff]
  %v19 = vlaneseq
  %v20 = vand.u32 %v19, 127
  %v21 = vadd.s32 %v20, 128
  %v22 = vand.u32 %v20, 15
  %v23 = vand.u32 %v21, 15
  %vm24 = vcmp.lt.s32.totalorder %v20, 240
  %vm25 = vcmp.lt.s32.totalorder %v21, 240
  %vm26 = vcmp.ge.s32.totalorder %v20, 16
  %vm27 = vcmp.ge.s32.totalorder %v21, 16
  %vm28 = vcmp.lt.s32.totalorder %v22, 15
  %vm29 = vcmp.lt.s32.totalorder %v23, 15
  %vm30 = vcmp.ge.s32.totalorder %v22, 1
  %vm31 = vcmp.ge.s32.totalorder %v23, 1
  %vm32 = vcmp.lt.s32.totalorder %v20, 224
  %vm33 = vcmp.lt.s32.totalorder %v21, 224
  %vm34 = vcmp.ge.s32.totalorder %v20, 32
  %vm35 = vcmp.ge.s32.totalorder %v21, 32
  %vm36 = vcmp.lt.s32.totalorder %v22, 14
  %vm37 = vcmp.lt.s32.totalorder %v23, 14
  %vm38 = vcmp.ge.s32.totalorder %v22, 2
  %vm39 = vcmp.ge.s32.totalorder %v23, 2
  %v40 = vld [vmem:[%s1] sm:$0xff]
  %42 = vrot.lane.b32.xlu0 %v18, 17
  %v43 = vpop.permute.xlu0 %42
  %46 = vrot.lane.b32.xlu0 %v17, 17
  %v47 = vpop.permute.xlu0 %46
  %vm48 = vcmask 138240
  %v49 = vsel %vm48, %v47, %v43
  %v52 = vsel %vm48, %v43, %v47
  %vm53 = vmand %vm26, %vm30
  %vm54 = vmand %vm27, %vm31
  %v55 = vsel %vm53, 1, 0
  %v56 = vsel %vm54, 1, 0
  %vm57 = vcmp.eq.s32.totalorder %v55, 1
  %vm58 = vcmp.eq.s32.totalorder %v56, 1
  %v59 = vsel %vm57, %v52, 0.0
  %v60 = vsel %vm58, %v49, 0.0
  %61 = vrot.lane.b32.xlu0 %v18, 16
  %v62 = vpop.permute.xlu0 %61
  %64 = vrot.lane.b32.xlu0 %v17, 16
  %v65 = vpop.permute.xlu0 %64
  %vm66 = vcmask 130048
  %v67 = vsel %vm66, %v65, %v62
  %v70 = vsel %vm66, %v62, %v65
  %v71 = vsel %vm26, 1, 0
  %v72 = vsel %vm27, 1, 0
  %vm73 = vcmp.eq.s32.totalorder %v71, 1
  %vm74 = vcmp.eq.s32.totalorder %v72, 1
  %v75 = vsel %vm73, %v70, 0.0
  %v76 = vsel %vm74, %v67, 0.0
  %77 = vrot.lane.b32.xlu0 %v18, 15
  %v78 = vpop.permute.xlu0 %77
  %80 = vrot.lane.b32.xlu0 %v17, 15
  %v81 = vpop.permute.xlu0 %80
  %vm82 = vcmask 121856
  %v83 = vsel %vm82, %v81, %v78
  %v86 = vsel %vm82, %v78, %v81
  %vm87 = vmand %vm26, %vm28
  %vm88 = vmand %vm27, %vm29
  %v89 = vsel %vm87, 1, 0
  %v90 = vsel %vm88, 1, 0
  %vm91 = vcmp.eq.s32.totalorder %v89, 1
  %vm92 = vcmp.eq.s32.totalorder %v90, 1
  %v93 = vsel %vm91, %v86, 0.0
  %v94 = vsel %vm92, %v83, 0.0
  %95 = vrot.lane.b32.xlu0 %v18, 1
  %v96 = vpop.permute.xlu0 %95
  %98 = vrot.lane.b32.xlu0 %v17, 1
  %v99 = vpop.permute.xlu0 %98
  %vm100 = vcmask 7168
  %v101 = vsel %vm100, %v99, %v96
  %v104 = vsel %vm100, %v96, %v99
  %v105 = vsel %vm30, 1, 0
  %v106 = vsel %vm31, 1, 0
  %vm107 = vcmp.eq.s32.totalorder %v105, 1
  %vm108 = vcmp.eq.s32.totalorder %v106, 1
  %v109 = vsel %vm107, %v104, 0.0
  %v110 = vsel %vm108, %v101, 0.0
  %111 = vrot.lane.b32.xlu0 %v17, 127
  %v112 = vpop.permute.xlu0 %111
  %113 = vrot.lane.b32.xlu0 %v18, 127
  %v114 = vpop.permute.xlu0 %113
  %vm115 = vcmask 1039360
  %v116 = vsel %vm115, %v112, %v114
  %v120 = vsel %vm115, %v114, %v112
  %v121 = vsel %vm28, 1, 0
  %v122 = vsel %vm29, 1, 0
  %vm123 = vcmp.eq.s32.totalorder %v121, 1
  %vm124 = vcmp.eq.s32.totalorder %v122, 1
  %v125 = vsel %vm123, %v116, 0.0
  %v126 = vsel %vm124, %v120, 0.0
  %127 = vrot.lane.b32.xlu0 %v17, 113
  %v128 = vpop.permute.xlu0 %127
  %129 = vrot.lane.b32.xlu0 %v18, 113
  %v130 = vpop.permute.xlu0 %129
  %vm131 = vcmask 924672
  %v132 = vsel %vm131, %v128, %v130
  %v136 = vsel %vm131, %v130, %v128
  %vm137 = vmand %vm24, %vm30
  %vm138 = vmand %vm25, %vm31
  %v139 = vsel %vm137, 1, 0
  %v140 = vsel %vm138, 1, 0
  %vm141 = vcmp.eq.s32.totalorder %v139, 1
  %vm142 = vcmp.eq.s32.totalorder %v140, 1
  %v143 = vsel %vm141, %v132, 0.0
  %v144 = vsel %vm142, %v136, 0.0
  %145 = vrot.lane.b32.xlu0 %v17, 112
  %v146 = vpop.permute.xlu0 %145
  %147 = vrot.lane.b32.xlu0 %v18, 112
  %v148 = vpop.permute.xlu0 %147
  %vm149 = vcmask 916480
  %v150 = vsel %vm149, %v146, %v148
  %v154 = vsel %vm149, %v148, %v146
  %v155 = vsel %vm24, 1, 0
  %v156 = vsel %vm25, 1, 0
  %vm157 = vcmp.eq.s32.totalorder %v155, 1
  %vm158 = vcmp.eq.s32.totalorder %v156, 1
  %v159 = vsel %vm157, %v150, 0.0
  %v160 = vsel %vm158, %v154, 0.0
  %161 = vrot.lane.b32.xlu0 %v17, 111
  %v162 = vpop.permute.xlu0 %161
  %163 = vrot.lane.b32.xlu0 %v18, 111
  %v164 = vpop.permute.xlu0 %163
  %vm165 = vcmask 908288
  %v166 = vsel %vm165, %v162, %v164
  %v170 = vsel %vm165, %v164, %v162
  %vm171 = vmand %vm24, %vm28
  %vm172 = vmand %vm25, %vm29
  %v173 = vsel %vm171, 1, 0
  %v174 = vsel %vm172, 1, 0
  %vm175 = vcmp.eq.s32.totalorder %v173, 1
  %vm176 = vcmp.eq.s32.totalorder %v174, 1
  %v177 = vsel %vm175, %v166, 0.0
  %v178 = vsel %vm176, %v170, 0.0
  %vm179 = vcmask 654336
  %v181 = vsel %vm179, %v40, 0
  %183 = vmatprep.subr.mxu0 %v60
  %184 = vmatpush1.msra.mxu0 %v59
  %185 = vmatprep.subr.mxu0 %v76
  %186 = vmatpush1.msra.mxu0 %v75
  %187 = vmatprep.subr.mxu0 %v94
  %188 = vmatpush1.msra.mxu0 %v93
  %189 = vmatprep.subr.mxu0 %v110
  %190 = vmatpush1.msra.mxu0 %v109
  %191 = vmatprep.subr.mxu0 %v18
  %192 = vmatpush1.msra.mxu0 %v17
  %193 = vmatprep.subr.mxu0 %v126
  %194 = vmatpush1.msra.mxu0 %v125
  %195 = vmatprep.subr.mxu0 %v144
  %196 = vmatpush1.msra.mxu0 %v143
  %197 = vmatprep.subr.mxu0 %v160
  %198 = vmatpush1.msra.mxu0 %v159
  %199 = vmatprep.subr.mxu0 %v178
  %200 = vmatpush1.msra.mxu0 %v177
  %201 = vmatprep.subr.mxu0 1.0
  %202 = vmatpush1.msra.mxu0 1.0
  %203 = vmatprep.subr.mxu0 0.0
  %204 = vmatpush1.msra.mxu0 0.0
  %205 = vmatprep.subr.mxu0 0.0
  %206 = vmatpush1.msra.mxu0 0.0
  %207 = vmatprep.subr.mxu0 0.0
  %208 = vmatpush1.msra.mxu0 0.0
  %209 = vmatprep.subr.mxu0 0.0
  %210 = vmatpush1.msra.mxu0 0.0
  %211 = vmatprep.subr.mxu0 0.0
  %212 = vmatpush1.msra.mxu0 0.0
  %213 = vmatprep.subr.mxu0 0.0
  %214 = vmatpush1.msra.mxu0 0.0
  %215 = vmatprep.subr.mxu0 0.0
  %216 = vmatpush1.msra.mxu0 0.0
  %217 = vmatprep.subr.mxu0 0.0
  %218 = vmatpush1.msra.mxu0 0.0
  %219 = vmatprep.subr.mxu0 0.0
  %220 = vmatpush1.msra.mxu0 0.0
  %221 = vmatprep.subr.mxu0 0.0
  %222 = vmatpush1.msra.mxu0 0.0
  %223 = vmatprep.subr.mxu0 0.0
  %224 = vmatpush1.msra.mxu0 0.0
  %225 = vmatprep.subr.mxu0 0.0
  %226 = vmatpush1.msra.mxu0 0.0
  %227 = vmatprep.subr.mxu0 0.0
  %228 = vmatpush1.msra.mxu0 0.0
  %229 = vmatprep.subr.mxu0 0.0
  %230 = vmatpush1.msra.mxu0 0.0
  %231 = vmatprep.subr.mxu0 0.0
  %232 = vmatpush1.msra.mxu0 0.0
  %233 = vmatprep.subr.mxu0 0.0
  %234 = vmatpush1.msra.mxu0 0.0
  %235 = vmatprep.subr.mxu0 0.0
  %236 = vmatpush1.msra.mxu0 0.0
  %237 = vmatprep.subr.mxu0 0.0
  %238 = vmatpush1.msra.mxu0 0.0
  %239 = vmatprep.subr.mxu0 0.0
  %240 = vmatpush1.msra.mxu0 0.0
  %241 = vmatprep.subr.mxu0 0.0
  %242 = vmatpush1.msra.mxu0 0.0
  %243 = vmatprep.subr.mxu0 0.0
  %244 = vmatpush1.msra.mxu0 0.0
  %245 = vmatprep.subr.mxu0 0.0
  %246 = vmatpush1.msra.mxu0 0.0
  %247 = vmatprep.mubr.f32.mxu0 0.0
  %248 = vmatmul.mubr.f32.gmra.mrb[0].mxu0 %v181
  %v249 = vpop.f32.mrb[0].mxu0
  %v250 = vadd.f32 0.0, %v249
  %v251 = vpop.f32.mrb[0].mxu0
  %v252 = vadd.f32 0.0, %v251
  %253 = vdwg.mxu0
  %vm254 = vcmp.gt.f32.partialorder %v250, 0.0
  %vm255 = vcmp.gt.f32.partialorder %v252, 0.0
  %v256 = vmul.f32 %v250, 0.2
  %v257 = vmul.f32 %v252, 0.2
  %v258 = vsel %vm254, %v250, %v256
  %v259 = vsel %vm255, %v252, %v257
  %v260 = vld [vmem:[%s2] sm:$0xff]
  %261 = vrot.lane.b32.xlu0 %v18, 34
  %v262 = vpop.permute.xlu0 %261
  %264 = vrot.lane.b32.xlu0 %v17, 34
  %v265 = vpop.permute.xlu0 %264
  %vm266 = vcmask 277504
  %v267 = vsel %vm266, %v265, %v262
  %v270 = vsel %vm266, %v262, %v265
  %vm271 = vmand %vm34, %vm38
  %vm272 = vmand %vm35, %vm39
  %v273 = vsel %vm271, 1, 0
  %v274 = vsel %vm272, 1, 0
  %vm275 = vcmp.eq.s32.totalorder %v273, 1
  %vm276 = vcmp.eq.s32.totalorder %v274, 1
  %v277 = vsel %vm275, %v270, 0.0
  %v278 = vsel %vm276, %v267, 0.0
  %279 = vrot.lane.b32.xlu0 %v18, 32
  %v280 = vpop.permute.xlu0 %279
  %282 = vrot.lane.b32.xlu0 %v17, 32
  %v283 = vpop.permute.xlu0 %282
  %vm284 = vcmask 261120
  %v285 = vsel %vm284, %v283, %v280
  %v288 = vsel %vm284, %v280, %v283
  %v289 = vsel %vm34, 1, 0
  %v290 = vsel %vm35, 1, 0
  %vm291 = vcmp.eq.s32.totalorder %v289, 1
  %vm292 = vcmp.eq.s32.totalorder %v290, 1
  %v293 = vsel %vm291, %v288, 0.0
  %v294 = vsel %vm292, %v285, 0.0
  %295 = vrot.lane.b32.xlu0 %v18, 30
  %v296 = vpop.permute.xlu0 %295
  %298 = vrot.lane.b32.xlu0 %v17, 30
  %v299 = vpop.permute.xlu0 %298
  %vm300 = vcmask 244736
  %v301 = vsel %vm300, %v299, %v296
  %v304 = vsel %vm300, %v296, %v299
  %vm305 = vmand %vm34, %vm36
  %vm306 = vmand %vm35, %vm37
  %v307 = vsel %vm305, 1, 0
  %v308 = vsel %vm306, 1, 0
  %vm309 = vcmp.eq.s32.totalorder %v307, 1
  %vm310 = vcmp.eq.s32.totalorder %v308, 1
  %v311 = vsel %vm309, %v304, 0.0
  %v312 = vsel %vm310, %v301, 0.0
  %313 = vrot.lane.b32.xlu0 %v18, 2
  %v314 = vpop.permute.xlu0 %313
  %316 = vrot.lane.b32.xlu0 %v17, 2
  %v317 = vpop.permute.xlu0 %316
  %vm318 = vcmask 15360
  %v319 = vsel %vm318, %v317, %v314
  %v322 = vsel %vm318, %v314, %v317
  %v323 = vsel %vm38, 1, 0
  %v324 = vsel %vm39, 1, 0
  %vm325 = vcmp.eq.s32.totalorder %v323, 1
  %vm326 = vcmp.eq.s32.totalorder %v324, 1
  %v327 = vsel %vm325, %v322, 0.0
  %v328 = vsel %vm326, %v319, 0.0
  %329 = vrot.lane.b32.xlu0 %v17, 126
  %v330 = vpop.permute.xlu0 %329
  %331 = vrot.lane.b32.xlu0 %v18, 126
  %v332 = vpop.permute.xlu0 %331
  %vm333 = vcmask 1031168
  %v334 = vsel %vm333, %v330, %v332
  %v338 = vsel %vm333, %v332, %v330
  %v339 = vsel %vm36, 1, 0
  %v340 = vsel %vm37, 1, 0
  %vm341 = vcmp.eq.s32.totalorder %v339, 1
  %vm342 = vcmp.eq.s32.totalorder %v340, 1
  %v343 = vsel %vm341, %v334, 0.0
  %v344 = vsel %vm342, %v338, 0.0
  %345 = vrot.lane.b32.xlu0 %v17, 98
  %v346 = vpop.permute.xlu0 %345
  %347 = vrot.lane.b32.xlu0 %v18, 98
  %v348 = vpop.permute.xlu0 %347
  %vm349 = vcmask 801792
  %v350 = vsel %vm349, %v346, %v348
  %v354 = vsel %vm349, %v348, %v346
  %vm355 = vmand %vm32, %vm38
  %vm356 = vmand %vm33, %vm39
  %v357 = vsel %vm355, 1, 0
  %v358 = vsel %vm356, 1, 0
  %vm359 = vcmp.eq.s32.totalorder %v357, 1
  %vm360 = vcmp.eq.s32.totalorder %v358, 1
  %v361 = vsel %vm359, %v350, 0.0
  %v362 = vsel %vm360, %v354, 0.0
  %363 = vrot.lane.b32.xlu0 %v17, 96
  %v364 = vpop.permute.xlu0 %363
  %365 = vrot.lane.b32.xlu0 %v18, 96
  %v366 = vpop.permute.xlu0 %365
  %vm367 = vcmask 785408
  %v368 = vsel %vm367, %v364, %v366
  %v372 = vsel %vm367, %v366, %v364
  %v373 = vsel %vm32, 1, 0
  %v374 = vsel %vm33, 1, 0
  %vm375 = vcmp.eq.s32.totalorder %v373, 1
  %vm376 = vcmp.eq.s32.totalorder %v374, 1
  %v377 = vsel %vm375, %v368, 0.0
  %v378 = vsel %vm376, %v372, 0.0
  %379 = vrot.lane.b32.xlu0 %v17, 94
  %v380 = vpop.permute.xlu0 %379
  %381 = vrot.lane.b32.xlu0 %v18, 94
  %v382 = vpop.permute.xlu0 %381
  %vm383 = vcmask 769024
  %v384 = vsel %vm383, %v380, %v382
  %v388 = vsel %vm383, %v382, %v380
  %vm389 = vmand %vm32, %vm36
  %vm390 = vmand %vm33, %vm37
  %v391 = vsel %vm389, 1, 0
  %v392 = vsel %vm390, 1, 0
  %vm393 = vcmp.eq.s32.totalorder %v391, 1
  %vm394 = vcmp.eq.s32.totalorder %v392, 1
  %v395 = vsel %vm393, %v384, 0.0
  %v396 = vsel %vm394, %v388, 0.0
  %v398 = vsel %vm179, %v260, 0
  %400 = vmatprep.subr.mxu0 %v278
  %401 = vmatpush1.msra.mxu0 %v277
  %402 = vmatprep.subr.mxu0 %v294
  %403 = vmatpush1.msra.mxu0 %v293
  %404 = vmatprep.subr.mxu0 %v312
  %405 = vmatpush1.msra.mxu0 %v311
  %406 = vmatprep.subr.mxu0 %v328
  %407 = vmatpush1.msra.mxu0 %v327
  %408 = vmatprep.subr.mxu0 %v18
  %409 = vmatpush1.msra.mxu0 %v17
  %410 = vmatprep.subr.mxu0 %v344
  %411 = vmatpush1.msra.mxu0 %v343
  %412 = vmatprep.subr.mxu0 %v362
  %413 = vmatpush1.msra.mxu0 %v361
  %414 = vmatprep.subr.mxu0 %v378
  %415 = vmatpush1.msra.mxu0 %v377
  %416 = vmatprep.subr.mxu0 %v396
  %417 = vmatpush1.msra.mxu0 %v395
  %418 = vmatprep.subr.mxu0 1.0
  %419 = vmatpush1.msra.mxu0 1.0
  %420 = vmatprep.subr.mxu0 0.0
  %421 = vmatpush1.msra.mxu0 0.0
  %422 = vmatprep.subr.mxu0 0.0
  %423 = vmatpush1.msra.mxu0 0.0
  %424 = vmatprep.subr.mxu0 0.0
  %425 = vmatpush1.msra.mxu0 0.0
  %426 = vmatprep.subr.mxu0 0.0
  %427 = vmatpush1.msra.mxu0 0.0
  %428 = vmatprep.subr.mxu0 0.0
  %429 = vmatpush1.msra.mxu0 0.0
  %430 = vmatprep.subr.mxu0 0.0
  %431 = vmatpush1.msra.mxu0 0.0
  %432 = vmatprep.subr.mxu0 0.0
  %433 = vmatpush1.msra.mxu0 0.0
  %434 = vmatprep.subr.mxu0 0.0
  %435 = vmatpush1.msra.mxu0 0.0
  %436 = vmatprep.subr.mxu0 0.0
  %437 = vmatpush1.msra.mxu0 0.0
  %438 = vmatprep.subr.mxu0 0.0
  %439 = vmatpush1.msra.mxu0 0.0
  %440 = vmatprep.subr.mxu0 0.0
  %441 = vmatpush1.msra.mxu0 0.0
  %442 = vmatprep.subr.mxu0 0.0
  %443 = vmatpush1.msra.mxu0 0.0
  %444 = vmatprep.subr.mxu0 0.0
  %445 = vmatpush1.msra.mxu0 0.0
  %446 = vmatprep.subr.mxu0 0.0
  %447 = vmatpush1.msra.mxu0 0.0
  %448 = vmatprep.subr.mxu0 0.0
  %449 = vmatpush1.msra.mxu0 0.0
  %450 = vmatprep.subr.mxu0 0.0
  %451 = vmatpush1.msra.mxu0 0.0
  %452 = vmatprep.subr.mxu0 0.0
  %453 = vmatpush1.msra.mxu0 0.0
  %454 = vmatprep.subr.mxu0 0.0
  %455 = vmatpush1.msra.mxu0 0.0
  %456 = vmatprep.subr.mxu0 0.0
  %457 = vmatpush1.msra.mxu0 0.0
  %458 = vmatprep.subr.mxu0 0.0
  %459 = vmatpush1.msra.mxu0 0.0
  %460 = vmatprep.subr.mxu0 0.0
  %461 = vmatpush1.msra.mxu0 0.0
  %462 = vmatprep.subr.mxu0 0.0
  %463 = vmatpush1.msra.mxu0 0.0
  %464 = vmatprep.mubr.f32.mxu0 0.0
  %465 = vmatmul.mubr.f32.gmra.mrb[0].mxu0 %v398
  %v466 = vpop.f32.mrb[0].mxu0
  %v467 = vadd.f32 0.0, %v466
  %v468 = vpop.f32.mrb[0].mxu0
  %v469 = vadd.f32 0.0, %v468
  %470 = vdwg.mxu0
  %vm471 = vcmp.gt.f32.partialorder %v467, 0.0
  %vm472 = vcmp.gt.f32.partialorder %v469, 0.0
  %v473 = vmul.f32 %v467, 0.2
  %v474 = vmul.f32 %v469, 0.2
  %v475 = vsel %vm471, %v467, %v473
  %v476 = vsel %vm472, %v469, %v474
  %v477 = vadd.f32 %v258, %v475
  %v478 = vadd.f32 %v259, %v476
  %v479 = vld [vmem:[%s3] sm:$0xff]
  %v481 = vsel %vm66, %v479, 0
  %483 = vmatprep.subr.mxu0 %v478
  %484 = vmatpush1.msra.mxu0 %v477
  %485 = vmatprep.subr.mxu0 1.0
  %486 = vmatpush1.msra.mxu0 1.0
  %487 = vmatprep.subr.mxu0 0.0
  %488 = vmatpush1.msra.mxu0 0.0
  %489 = vmatprep.subr.mxu0 0.0
  %490 = vmatpush1.msra.mxu0 0.0
  %491 = vmatprep.subr.mxu0 0.0
  %492 = vmatpush1.msra.mxu0 0.0
  %493 = vmatprep.subr.mxu0 0.0
  %494 = vmatpush1.msra.mxu0 0.0
  %495 = vmatprep.subr.mxu0 0.0
  %496 = vmatpush1.msra.mxu0 0.0
  %497 = vmatprep.subr.mxu0 0.0
  %498 = vmatpush1.msra.mxu0 0.0
  %499 = vmatprep.subr.mxu0 0.0
  %500 = vmatpush1.msra.mxu0 0.0
  %501 = vmatprep.subr.mxu0 0.0
  %502 = vmatpush1.msra.mxu0 0.0
  %503 = vmatprep.subr.mxu0 0.0
  %504 = vmatpush1.msra.mxu0 0.0
  %505 = vmatprep.subr.mxu0 0.0
  %506 = vmatpush1.msra.mxu0 0.0
  %507 = vmatprep.subr.mxu0 0.0
  %508 = vmatpush1.msra.mxu0 0.0
  %509 = vmatprep.subr.mxu0 0.0
  %510 = vmatpush1.msra.mxu0 0.0
  %511 = vmatprep.subr.mxu0 0.0
  %512 = vmatpush1.msra.mxu0 0.0
  %513 = vmatprep.subr.mxu0 0.0
  %514 = vmatpush1.msra.mxu0 0.0
  %515 = vmatprep.subr.mxu0 0.0
  %516 = vmatpush1.msra.mxu0 0.0
  %517 = vmatprep.subr.mxu0 0.0
  %518 = vmatpush1.msra.mxu0 0.0
  %519 = vmatprep.subr.mxu0 0.0
  %520 = vmatpush1.msra.mxu0 0.0
  %521 = vmatprep.subr.mxu0 0.0
  %522 = vmatpush1.msra.mxu0 0.0
  %523 = vmatprep.subr.mxu0 0.0
  %524 = vmatpush1.msra.mxu0 0.0
  %525 = vmatprep.subr.mxu0 0.0
  %526 = vmatpush1.msra.mxu0 0.0
  %527 = vmatprep.subr.mxu0 0.0
  %528 = vmatpush1.msra.mxu0 0.0
  %529 = vmatprep.subr.mxu0 0.0
  %530 = vmatpush1.msra.mxu0 0.0
  %531 = vmatprep.subr.mxu0 0.0
  %532 = vmatpush1.msra.mxu0 0.0
  %533 = vmatprep.subr.mxu0 0.0
  %534 = vmatpush1.msra.mxu0 0.0
  %535 = vmatprep.subr.mxu0 0.0
  %536 = vmatpush1.msra.mxu0 0.0
  %537 = vmatprep.subr.mxu0 0.0
  %538 = vmatpush1.msra.mxu0 0.0
  %539 = vmatprep.subr.mxu0 0.0
  %540 = vmatpush1.msra.mxu0 0.0
  %541 = vmatprep.subr.mxu0 0.0
  %542 = vmatpush1.msra.mxu0 0.0
  %543 = vmatprep.subr.mxu0 0.0
  %544 = vmatpush1.msra.mxu0 0.0
  %545 = vmatprep.subr.mxu0 0.0
  %546 = vmatpush1.msra.mxu0 0.0
  %547 = vmatprep.mubr.f32.mxu0 0.0
  %548 = vmatmul.mubr.f32.gmra.mrb[0].mxu0 %v481
  %v549 = vpop.f32.mrb[0].mxu0
  %v550 = vadd.f32 %v17, %v549
  %v551 = vpop.f32.mrb[0].mxu0
  %v552 = vadd.f32 %v18, %v551
  %553 = vdwg.mxu0
  %554 = vst [vmem:[%s4] sm:$0xff] %v550
  %555 = vst [vmem:[%s4 + $0x8] sm:$0xff] %v552
  // Predicated region
  $region18: #{ms_rb_forward.1} parent=0 // pred_check
    _
  $region19: #{ms_rb_forward.1} parent=0 // pred_check_branch
    %557 = sbr.rel (0) target = $region21
  $region20: #{ms_rb_forward.1} parent=0 // pred_region
    _
  $region21: #{ms_rb_forward.1} parent=0 // pred_fallthru
    _
  // Predicated region
  $region22: #{ms_rb_forward.1} parent=0 // pred_check
    _
  $region23: #{ms_rb_forward.1} parent=0 // pred_check_branch
    %559 = sbr.rel (0) target = $region25
  $region24: #{ms_rb_forward.1} parent=0 // pred_region
    _
  $region25: #{ms_rb_forward.1} parent=0 // pred_fallthru
    _

</llo_original>
